<compile_context>
chip_gen: v5e
topology: v5e:2x2
jax: 0.10.0
libtpu: 0.0.40
codegen_flags: <defaults>
</compile_context>

<pallas_src>
import math

import jax
import jax.numpy as jnp
import numpy as np
from jax import lax
from jax.experimental import pallas as pl
from jax.experimental.pallas import tpu as pltpu

X_DIM = 1       # module default
HIDDEN = 100    # logical hidden width (PyTorch module)
HPAD = 128      # lane/sublane-aligned hidden width used inside the kernel


def _leaky_relu(x):
    # F.leaky_relu default negative_slope = 0.01; for slope in (0,1) this is
    # exactly max(x, 0.01*x) -- 2 VPU ops instead of a compare+select.
    return jnp.maximum(x, 0.01 * x)


def fcsmall_kernel(bx_ref, br_ref, pk_ref, w2_ref, w3_ref, w4_ref, b4_ref,
                   out_ref):
    bx = bx_ref[...]                       # (1, TM)
    br = br_ref[...]                       # (1, TM)
    pk = pk_ref[...]                       # (128, 8): w1 | b1 | w2r | b2 | w3r | b3 | 0 | 0

    w1 = pk[:, 0:1]
    b1 = pk[:, 1:2]
    w2r = pk[:, 2:3]
    b2 = pk[:, 3:4]
    w3r = pk[:, 4:5]
    b3 = pk[:, 5:6]

    # fc1 (x_dim == 1): K=1 matmul is an outer product -> VPU broadcast mul.
    h = _leaky_relu(w1 * bx + b1)                                    # (128, TM) f32

    # fc2: cat([h, br]) @ W2  ==  W2h^T @ h  +  (w2r * br + b2); the br column
    # is folded into the bias on the VPU, only the 128x128 GEMM hits the MXU.
    h = _leaky_relu(
        jnp.dot(w2_ref[...], h.astype(jnp.bfloat16),
                preferred_element_type=jnp.float32)
        + (w2r * br + b2))                                           # (128, TM)

    # fc3 (same structure).
    h = _leaky_relu(
        jnp.dot(w3_ref[...], h.astype(jnp.bfloat16),
                preferred_element_type=jnp.float32)
        + (w3r * br + b3))                                           # (128, TM)

    # drop3: identity in eval mode.

    # fc4: (8, 128) @ (128, TM) -> (8, TM); only rows 0/1 are live (rows 2..7
    # of W4^T / b4 are zero-padded), so this is a cheap M=8 MXU matmul.
    h4 = jnp.dot(w4_ref[...], h.astype(jnp.bfloat16),
                 preferred_element_type=jnp.float32) + b4_ref[...]   # (8, TM)

    # Lane-dense transposed output: row 0 = mean, row 1 = abs(.) + 0.01.
    r = h4[0:2, :]                                                   # (2, TM)
    row = lax.broadcasted_iota(jnp.int32, r.shape, 0)
    out_ref[...] = jnp.where(row == 1, jnp.abs(r) + 0.01, r)


def _choose_tm(batch, tm_max):
    """Batch tile: multiple of 128; >= 2 grid steps on v7x when possible."""
    tm_max = max(128, (tm_max // 128) * 128)
    b_aligned = pl.cdiv(batch, 128) * 128
    tm = min(tm_max, b_aligned)
    # v7x has 2 TensorCores; keep at least 2 steps on the "parallel" batch axis
    # so both get work (harmless on single-TC v5e/v6e).
    if b_aligned > 128 and tm == b_aligned:
        tm = pl.cdiv(b_aligned // 2, 128) * 128
    return max(tm, 128)


def fcsmall_forward(bx, br, padded_params, *, tm_max=2048):
    """Run the FcSmall forward pass as one batch-tiled Pallas kernel call."""
    assert bx.shape[1] == X_DIM == 1, "kernel specialized for x_dim == 1"
    B = bx.shape[0]
    tm = _choose_tm(B, tm_max)
    B_pad = pl.cdiv(B, tm) * tm

    # Batch lives in the lane dimension: two separate (1, B_pad) row inputs
    # (no concat pass; pad only the ragged tail).
    bxr = bx.astype(jnp.float32).reshape(1, B)
    brr = br.astype(jnp.float32).reshape(1, B)
    if B_pad != B:
        bxr = jnp.pad(bxr, ((0, 0), (0, B_pad - B)))
        brr = jnp.pad(brr, ((0, 0), (0, B_pad - B)))

    pk, w2hT, w3hT, w4T, b4T = padded_params

    out = pl.pallas_call(
        fcsmall_kernel,
        out_shape=jax.ShapeDtypeStruct((2, B_pad), jnp.float32),
        grid=(B_pad // tm,),
        in_specs=[
            pl.BlockSpec((1, tm), lambda i: (0, i)),      # bx row
            pl.BlockSpec((1, tm), lambda i: (0, i)),      # br row
            # Weights: full-array blocks with constant index_map -> fetched
            # once, VMEM-resident across all grid steps.
            pl.BlockSpec(pk.shape, lambda i: (0, 0)),
            pl.BlockSpec(w2hT.shape, lambda i: (0, 0)),
            pl.BlockSpec(w3hT.shape, lambda i: (0, 0)),
            pl.BlockSpec(w4T.shape, lambda i: (0, 0)),
            pl.BlockSpec(b4T.shape, lambda i: (0, 0)),
        ],
        out_specs=pl.BlockSpec((2, tm), lambda i: (0, i)),
        compiler_params=pltpu.CompilerParams(
            dimension_semantics=("parallel",)),
    )(bxr, brr, pk, w2hT, w3hT, w4T, b4T)

    mean = out[0, :B].reshape(B, 1)
    stddev = out[1, :B].reshape(B, 1)
    return mean, stddev


def init_params(key, x_dim=X_DIM, hidden=HIDDEN):
    """Deterministic init mimicking nn.Linear's U(-1/sqrt(fan_in), 1/sqrt(fan_in)).

    Returns the *logical* (unpadded) params, weights in [in, out] layout.
    """
    keys = jax.random.split(key, 8)

    def unif(k, shape, fan_in):
        bound = 1.0 / math.sqrt(fan_in)
        return jax.random.uniform(k, shape, jnp.float32, -bound, bound)

    w1 = unif(keys[0], (x_dim, hidden), x_dim)                 # fc1
    b1 = unif(keys[1], (1, hidden), x_dim)
    w2 = unif(keys[2], (hidden + 1, hidden), hidden + 1)       # fc2 (cat input)
    b2 = unif(keys[3], (1, hidden), hidden + 1)
    w3 = unif(keys[4], (hidden + 1, hidden), hidden + 1)       # fc3 (cat input)
    b3 = unif(keys[5], (1, hidden), hidden + 1)
    w4 = unif(keys[6], (hidden, 2), hidden)                    # fc4
    b4 = unif(keys[7], (1, 2), hidden)
    return (w1, b1, w2, b2, w3, b3, w4, b4)


def pad_params(raw, hidden=HIDDEN, hpad=HPAD):
    """Transpose to the kernel's [out, in] orientation, zero-pad 100 -> 128,
    pack the vector params into one (128, 8) tile, cast GEMM weights to bf16."""
    w1, b1, w2, b2, w3, b3, w4, b4 = raw
    ph = hpad - hidden

    def col(a):  # (1, hidden) row -> (hpad, 1) zero-padded column
        return jnp.pad(a.T.astype(jnp.float32), ((0, ph), (0, 0)))

    # Packed vector params (single (128, 8) f32 VMEM tile):
    #   col 0: fc1 weight (x_dim == 1)   col 1: fc1 bias
    #   col 2: fc2 br-row weight         col 3: fc2 bias
    #   col 4: fc3 br-row weight         col 5: fc3 bias
    pk = jnp.concatenate([
        col(w1),
        col(b1),
        col(w2[hidden:, :]),
        col(b2),
        col(w3[hidden:, :]),
        col(b3),
        jnp.zeros((hpad, 2), jnp.float32),
    ], axis=1)                                                     # (128, 8) f32

    # GEMM weights, transposed to [out, in], zero-padded, bf16 (f32 MXU path is
    # emulated on v5e/v6e and absent on v7x).
    w2hT = jnp.pad(w2[:hidden, :].T, ((0, ph), (0, ph))).astype(jnp.bfloat16)
    w3hT = jnp.pad(w3[:hidden, :].T, ((0, ph), (0, ph))).astype(jnp.bfloat16)
    w4T = jnp.pad(w4.T, ((0, 8 - w4.shape[1]), (0, ph))).astype(jnp.bfloat16)  # (8, 128)
    b4T = jnp.pad(b4.T.astype(jnp.float32), ((0, 8 - b4.shape[1]), (0, 0)))    # (8, 1)
    return (pk, w2hT, w3hT, w4T, b4T)


def reference_forward(bx, br, raw):
    """Pure-JAX reference mirroring the PyTorch forward (eval mode, f32)."""
    w1, b1, w2, b2, w3, b3, w4, b4 = raw
    lr = lambda x: jnp.where(x > 0, x, 0.01 * x)
    h = lr(bx @ w1 + b1)
    h = jnp.concatenate([h, br], axis=1)
    h = lr(h @ w2 + b2)
    h = jnp.concatenate([h, br], axis=1)
    h = lr(h @ w3 + b3)
    h4 = h @ w4 + b4
    return h4[:, 0:1], jnp.abs(h4[:, 1:2]) + 0.01


if __name__ == "__main__":
    key = jax.random.PRNGKey(0)
    k_params, k_bx, k_br = jax.random.split(key, 3)

    B = 8
    raw_params = init_params(k_params)
    padded_params = pad_params(raw_params)
    bx = jax.random.normal(k_bx, (B, X_DIM), jnp.float32)
    br = jax.random.uniform(k_br, (B, 1), jnp.float32)

    mean, stddev = fcsmall_forward(bx, br, padded_params)
    jax.block_until_ready((mean, stddev))

    mean_ref, stddev_ref = reference_forward(bx, br, raw_params)
    # bf16 GEMM operands (f32 accumulation) -> ~1e-2 level tolerance vs the
    # pure-f32 reference.
    np.testing.assert_allclose(np.asarray(mean), np.asarray(mean_ref),
                               rtol=2e-2, atol=5e-2)
    np.testing.assert_allclose(np.asarray(stddev), np.asarray(stddev_ref),
                               rtol=2e-2, atol=5e-2)

    print("KERNEL_OK")
</pallas_src>

<mosaic_0001>
module attributes {stable_mosaic.version = 11 : i64} {
  func.func @fcsmall_kernel(%arg0: i32, %arg1: memref<1x128xf32, #tpu.memory_space<vmem>>, %arg2: memref<1x128xf32, #tpu.memory_space<vmem>>, %arg3: memref<128x8xf32, #tpu.memory_space<vmem>>, %arg4: memref<128x128xbf16, #tpu.memory_space<vmem>>, %arg5: memref<128x128xbf16, #tpu.memory_space<vmem>>, %arg6: memref<8x128xbf16, #tpu.memory_space<vmem>>, %arg7: memref<8x1xf32, #tpu.memory_space<vmem>>, %arg8: memref<2x128xf32, #tpu.memory_space<vmem>>) attributes {dimension_semantics = [#tpu.dimension_semantics<parallel>], iteration_bounds = array<i64: 1>, scalar_prefetch = 0 : i64, scratch_operands = 0 : i64, tpu.core_type = #tpu.core_type<tc>, window_params = [{transform_indices = @transform_0, window_bounds = array<i64: 1, 128>}, {transform_indices = @transform_1, window_bounds = array<i64: 1, 128>}, {pipeline_mode = #tpu.pipeline_mode<synchronous>, transform_indices = @transform_2, window_bounds = array<i64: 128, 8>}, {pipeline_mode = #tpu.pipeline_mode<synchronous>, transform_indices = @transform_3, window_bounds = array<i64: 128, 128>}, {pipeline_mode = #tpu.pipeline_mode<synchronous>, transform_indices = @transform_4, window_bounds = array<i64: 128, 128>}, {pipeline_mode = #tpu.pipeline_mode<synchronous>, transform_indices = @transform_5, window_bounds = array<i64: 8, 128>}, {pipeline_mode = #tpu.pipeline_mode<synchronous>, transform_indices = @transform_6, window_bounds = array<i64: 8, 1>}, {transform_indices = @transform_7, window_bounds = array<i64: 2, 128>}]} {
    %c0 = arith.constant 0 : index
    %c0_0 = arith.constant 0 : index
    %0 = vector.load %arg1[%c0, %c0_0] : memref<1x128xf32, #tpu.memory_space<vmem>>, vector<1x128xf32>
    %c0_1 = arith.constant 0 : index
    %c0_2 = arith.constant 0 : index
    %1 = vector.load %arg2[%c0_1, %c0_2] : memref<1x128xf32, #tpu.memory_space<vmem>>, vector<1x128xf32>
    %c0_3 = arith.constant 0 : index
    %c0_4 = arith.constant 0 : index
    %2 = vector.load %arg3[%c0_3, %c0_4] : memref<128x8xf32, #tpu.memory_space<vmem>>, vector<128x8xf32>
    %3 = vector.extract_strided_slice %2 {offsets = [0, 0], sizes = [128, 1], strides = [1, 1]} : vector<128x8xf32> to vector<128x1xf32>
    %4 = vector.extract_strided_slice %2 {offsets = [0, 1], sizes = [128, 1], strides = [1, 1]} : vector<128x8xf32> to vector<128x1xf32>
    %5 = vector.extract_strided_slice %2 {offsets = [0, 2], sizes = [128, 1], strides = [1, 1]} : vector<128x8xf32> to vector<128x1xf32>
    %6 = vector.extract_strided_slice %2 {offsets = [0, 3], sizes = [128, 1], strides = [1, 1]} : vector<128x8xf32> to vector<128x1xf32>
    %7 = vector.extract_strided_slice %2 {offsets = [0, 4], sizes = [128, 1], strides = [1, 1]} : vector<128x8xf32> to vector<128x1xf32>
    %8 = vector.extract_strided_slice %2 {offsets = [0, 5], sizes = [128, 1], strides = [1, 1]} : vector<128x8xf32> to vector<128x1xf32>
    %9 = vector.broadcast %3 : vector<128x1xf32> to vector<128x128xf32>
    %10 = vector.broadcast %0 : vector<1x128xf32> to vector<128x128xf32>
    %11 = arith.mulf %9, %10 : vector<128x128xf32>
    %12 = vector.broadcast %4 : vector<128x1xf32> to vector<128x128xf32>
    %13 = arith.addf %11, %12 : vector<128x128xf32>
    %cst = arith.constant 0.00999999977 : f32
    %14 = vector.broadcast %cst : f32 to vector<128x128xf32>
    %15 = arith.mulf %14, %13 : vector<128x128xf32>
    %16 = arith.maximumf %13, %15 : vector<128x128xf32>
    %c0_5 = arith.constant 0 : index
    %c0_6 = arith.constant 0 : index
    %17 = vector.load %arg4[%c0_5, %c0_6] : memref<128x128xbf16, #tpu.memory_space<vmem>>, vector<128x128xbf16>
    %18 = arith.truncf %16 : vector<128x128xf32> to vector<128x128xbf16>
    %cst_7 = arith.constant dense<0.000000e+00> : vector<128x128xf32>
    %19 = tpu.matmul %17, %18, %cst_7 {dimension_numbers = #tpu.dot_dimension_numbers<[1], [0], [0], [1], [0, 0, 1, 1], [], []>} : vector<128x128xbf16>, vector<128x128xbf16>, vector<128x128xf32> -> vector<128x128xf32>
    %20 = vector.broadcast %5 : vector<128x1xf32> to vector<128x128xf32>
    %21 = vector.broadcast %1 : vector<1x128xf32> to vector<128x128xf32>
    %22 = arith.mulf %20, %21 : vector<128x128xf32>
    %23 = vector.broadcast %6 : vector<128x1xf32> to vector<128x128xf32>
    %24 = arith.addf %22, %23 : vector<128x128xf32>
    %25 = arith.addf %19, %24 : vector<128x128xf32>
    %cst_8 = arith.constant 0.00999999977 : f32
    %26 = vector.broadcast %cst_8 : f32 to vector<128x128xf32>
    %27 = arith.mulf %26, %25 : vector<128x128xf32>
    %28 = arith.maximumf %25, %27 : vector<128x128xf32>
    %c0_9 = arith.constant 0 : index
    %c0_10 = arith.constant 0 : index
    %29 = vector.load %arg5[%c0_9, %c0_10] : memref<128x128xbf16, #tpu.memory_space<vmem>>, vector<128x128xbf16>
    %30 = arith.truncf %28 : vector<128x128xf32> to vector<128x128xbf16>
    %cst_11 = arith.constant dense<0.000000e+00> : vector<128x128xf32>
    %31 = tpu.matmul %29, %30, %cst_11 {dimension_numbers = #tpu.dot_dimension_numbers<[1], [0], [0], [1], [0, 0, 1, 1], [], []>} : vector<128x128xbf16>, vector<128x128xbf16>, vector<128x128xf32> -> vector<128x128xf32>
    %32 = vector.broadcast %7 : vector<128x1xf32> to vector<128x128xf32>
    %33 = vector.broadcast %1 : vector<1x128xf32> to vector<128x128xf32>
    %34 = arith.mulf %32, %33 : vector<128x128xf32>
    %35 = vector.broadcast %8 : vector<128x1xf32> to vector<128x128xf32>
    %36 = arith.addf %34, %35 : vector<128x128xf32>
    %37 = arith.addf %31, %36 : vector<128x128xf32>
    %cst_12 = arith.constant 0.00999999977 : f32
    %38 = vector.broadcast %cst_12 : f32 to vector<128x128xf32>
    %39 = arith.mulf %38, %37 : vector<128x128xf32>
    %40 = arith.maximumf %37, %39 : vector<128x128xf32>
    %c0_13 = arith.constant 0 : index
    %c0_14 = arith.constant 0 : index
    %41 = vector.load %arg6[%c0_13, %c0_14] : memref<8x128xbf16, #tpu.memory_space<vmem>>, vector<8x128xbf16>
    %42 = arith.truncf %40 : vector<128x128xf32> to vector<128x128xbf16>
    %cst_15 = arith.constant dense<0.000000e+00> : vector<8x128xf32>
    %43 = tpu.matmul %41, %42, %cst_15 {dimension_numbers = #tpu.dot_dimension_numbers<[1], [0], [0], [1], [0, 0, 1, 1], [], []>} : vector<8x128xbf16>, vector<128x128xbf16>, vector<8x128xf32> -> vector<8x128xf32>
    %c0_16 = arith.constant 0 : index
    %c0_17 = arith.constant 0 : index
    %44 = vector.load %arg7[%c0_16, %c0_17] : memref<8x1xf32, #tpu.memory_space<vmem>>, vector<8x1xf32>
    %45 = vector.broadcast %44 : vector<8x1xf32> to vector<8x128xf32>
    %46 = arith.addf %43, %45 : vector<8x128xf32>
    %47 = vector.extract_strided_slice %46 {offsets = [0, 0], sizes = [2, 128], strides = [1, 1]} : vector<8x128xf32> to vector<2x128xf32>
    %48 = tpu.iota {dimensions = array<i32: 0>} : vector<2x128xi32>
    %c1_i32 = arith.constant 1 : i32
    %49 = vector.broadcast %c1_i32 : i32 to vector<2x128xi32>
    %50 = arith.cmpi eq, %48, %49 : vector<2x128xi32>
    %51 = math.absf %47 : vector<2x128xf32>
    %cst_18 = arith.constant 0.00999999977 : f32
    %52 = vector.broadcast %cst_18 : f32 to vector<2x128xf32>
    %53 = arith.addf %51, %52 : vector<2x128xf32>
    %54 = arith.select %50, %53, %47 : vector<2x128xi1>, vector<2x128xf32>
    %c0_19 = arith.constant 0 : index
    %c0_20 = arith.constant 0 : index
    %55 = vector.load %arg8[%c0_19, %c0_20] : memref<2x128xf32, #tpu.memory_space<vmem>>, vector<2x128xf32>
    tpu.vector_store %arg8[%c0_19, %c0_20], %54 {strides = array<i32>} : memref<2x128xf32, #tpu.memory_space<vmem>>, vector<2x128xf32>,
    return
  }
  func.func @transform_0(%arg0: i32) -> (i32, i32) {
    %c0_i32 = arith.constant 0 : i32
    %c0_i32_0 = arith.constant 0 : i32
    return %c0_i32, %arg0 : i32, i32
  }
  func.func @transform_1(%arg0: i32) -> (i32, i32) {
    %c0_i32 = arith.constant 0 : i32
    %c0_i32_0 = arith.constant 0 : i32
    return %c0_i32, %arg0 : i32, i32
  }
  func.func @transform_2(%arg0: i32) -> (i32, i32) {
    %c0_i32 = arith.constant 0 : i32
    %c0_i32_0 = arith.constant 0 : i32
    %c0_i32_1 = arith.constant 0 : i32
    return %c0_i32, %c0_i32_0 : i32, i32
  }
  func.func @transform_3(%arg0: i32) -> (i32, i32) {
    %c0_i32 = arith.constant 0 : i32
    %c0_i32_0 = arith.constant 0 : i32
    %c0_i32_1 = arith.constant 0 : i32
    return %c0_i32, %c0_i32_0 : i32, i32
  }
  func.func @transform_4(%arg0: i32) -> (i32, i32) {
    %c0_i32 = arith.constant 0 : i32
    %c0_i32_0 = arith.constant 0 : i32
    %c0_i32_1 = arith.constant 0 : i32
    return %c0_i32, %c0_i32_0 : i32, i32
  }
  func.func @transform_5(%arg0: i32) -> (i32, i32) {
    %c0_i32 = arith.constant 0 : i32
    %c0_i32_0 = arith.constant 0 : i32
    %c0_i32_1 = arith.constant 0 : i32
    return %c0_i32, %c0_i32_0 : i32, i32
  }
  func.func @transform_6(%arg0: i32) -> (i32, i32) {
    %c0_i32 = arith.constant 0 : i32
    %c0_i32_0 = arith.constant 0 : i32
    %c0_i32_1 = arith.constant 0 : i32
    return %c0_i32, %c0_i32_0 : i32, i32
  }
  func.func @transform_7(%arg0: i32) -> (i32, i32) {
    %c0_i32 = arith.constant 0 : i32
    %c0_i32_0 = arith.constant 0 : i32
    return %c0_i32, %arg0 : i32, i32
  }
}

</mosaic_0001>

<llo_original>
// kernel: tpu_custom_call.1
$region0: #{tpu_custom_call.1}
  #allocation0 [shape = 'u32[]', space=smem, size = 0x4, offset = 0x4, fixed_abs, tag = 'smem constant byte address 0x4 - core index']
  #allocation1 [shape = 'u32[72,128]{1,0:T(1,128)}', space=vmem, size = 0x9000, scoped, tag = 'internal scratch']
  %s0 = inlined_call_operand.vmem [shape: f32[1,128], index: 0, kind: input, shape index: {}]
  %s1 = inlined_call_operand.vmem [shape: f32[1,128], index: 1, kind: input, shape index: {}]
  %s2 = inlined_call_operand.vmem [shape: f32[128,8], index: 2, kind: input, shape index: {}]
  %s3 = inlined_call_operand.vmem [shape: bf16[128,128], index: 3, kind: input, shape index: {}]
  %s4 = inlined_call_operand.vmem [shape: bf16[128,128], index: 4, kind: input, shape index: {}]
  %s5 = inlined_call_operand.vmem [shape: bf16[8,128], index: 5, kind: input, shape index: {}]
  %s6 = inlined_call_operand.vmem [shape: f32[8,1], index: 6, kind: input, shape index: {}]
  %s7 = inlined_call_operand.hbm [shape: f32[2,128], index: 7, kind: output, shape index: {}]
  %s8 = sld [smem:[#allocation0]]
  $region38: #{tpu_custom_call.1} parent=0
    _
  %s10 = ssub.s32 1, %s8
  %s11 = scalar_select 0, %s10, %s8
  $region1: #{tpu_custom_call.1} parent=0
    #allocation2 [shape = 'u8[1024]{0}', space=vmem, size = 0x400, scoped, tag = 'output window, operand 0, single buffered']
    #allocation3 [shape = 's32[1]{0}', space=sflag, size = 0x4, scoped, tag = 'scoped memory for tpu_custom_call.1']
    %12 = vsyncpa [#allocation3], 0
    // Predicated region
    $region2: #{tpu_custom_call.1} parent=1 // pred_check
      _
    $region3: #{tpu_custom_call.1} parent=1 // pred_check_branch
      %14 = sbr.rel (0) target = $region5
    $region4: #{tpu_custom_call.1} parent=1 // pred_region
      _
    $region5: #{tpu_custom_call.1} parent=1 // pred_fallthru
      _
    // Predicated region
    $region6: #{tpu_custom_call.1} parent=1 // pred_check
      _
    $region7: #{tpu_custom_call.1} parent=1 // pred_check_branch
      %16 = sbr.rel (0) target = $region9
    $region8: #{tpu_custom_call.1} parent=1 // pred_region
      _
    $region9: #{tpu_custom_call.1} parent=1 // pred_fallthru
      _
    // Predicated region
    $region10: #{tpu_custom_call.1} parent=1 // pred_check
      _
    $region11: #{tpu_custom_call.1} parent=1 // pred_check_branch
      %18 = sbr.rel (0) target = $region13
    $region12: #{tpu_custom_call.1} parent=1 // pred_region
      _
    $region13: #{tpu_custom_call.1} parent=1 // pred_fallthru
      _
    // Predicated region
    $region14: #{tpu_custom_call.1} parent=1 // pred_check
      _
    $region15: #{tpu_custom_call.1} parent=1 // pred_check_branch
      %20 = sbr.rel (0) target = $region17
    $region16: #{tpu_custom_call.1} parent=1 // pred_region
      _
    $region17: #{tpu_custom_call.1} parent=1 // pred_fallthru
      _
    // Predicated region
    $region18: #{tpu_custom_call.1} parent=1 // pred_check
      _
    $region19: #{tpu_custom_call.1} parent=1 // pred_check_branch
      %22 = sbr.rel (0) target = $region21
    $region20: #{tpu_custom_call.1} parent=1 // pred_region
      _
    $region21: #{tpu_custom_call.1} parent=1 // pred_fallthru
      _
    // Predicated region
    $region22: #{tpu_custom_call.1} parent=1 // pred_check
      _
    $region23: #{tpu_custom_call.1} parent=1 // pred_check_branch
      %24 = sbr.rel (0) target = $region25
    $region24: #{tpu_custom_call.1} parent=1 // pred_region
      _
    $region25: #{tpu_custom_call.1} parent=1 // pred_fallthru
      _
    // Predicated region
    $region26: #{tpu_custom_call.1} parent=1 // pred_check
      _
    $region27: #{tpu_custom_call.1} parent=1 // pred_check_branch
      %26 = sbr.rel (0) target = $region29
    $region28: #{tpu_custom_call.1} parent=1 // pred_region
      _
    $region29: #{tpu_custom_call.1} parent=1 // pred_fallthru
      _
    %v27 = vld [vmem:[%s0] sm:$0x1]
    %v28 = vld [vmem:[%s1] sm:$0x1]
    %v29 = vld [vmem:[%s2] sm:$0xff]
    %v30 = vld [vmem:[%s2 + $0x8] sm:$0xff]
    %v31 = vld [vmem:[%s2 + $0x10] sm:$0xff]
    %v32 = vld [vmem:[%s2 + $0x18] sm:$0xff]
    %v33 = vld [vmem:[%s2 + $0x20] sm:$0xff]
    %v34 = vld [vmem:[%s2 + $0x28] sm:$0xff]
    %v35 = vld [vmem:[%s2 + $0x30] sm:$0xff]
    %v36 = vld [vmem:[%s2 + $0x38] sm:$0xff]
    %v37 = vld [vmem:[%s2 + $0x40] sm:$0xff]
    %v38 = vld [vmem:[%s2 + $0x48] sm:$0xff]
    %v39 = vld [vmem:[%s2 + $0x50] sm:$0xff]
    %v40 = vld [vmem:[%s2 + $0x58] sm:$0xff]
    %v41 = vld [vmem:[%s2 + $0x60] sm:$0xff]
    %v42 = vld [vmem:[%s2 + $0x68] sm:$0xff]
    %v43 = vld [vmem:[%s2 + $0x70] sm:$0xff]
    %v44 = vld [vmem:[%s2 + $0x78] sm:$0xff]
    %46 = vset.pattern.permute.xlu0 0
    %47 = vperm.xlu0 %46, %v29
    %v48 = vpop.permute.xlu0 %47
    %51 = vset.pattern.permute.xlu0 0
    %52 = vperm.xlu0 %51, %v30
    %v53 = vpop.permute.xlu0 %52
    %56 = vset.pattern.permute.xlu0 0
    %57 = vperm.xlu0 %56, %v31
    %v58 = vpop.permute.xlu0 %57
    %61 = vset.pattern.permute.xlu0 0
    %62 = vperm.xlu0 %61, %v32
    %v63 = vpop.permute.xlu0 %62
    %66 = vset.pattern.permute.xlu0 0
    %67 = vperm.xlu0 %66, %v33
    %v68 = vpop.permute.xlu0 %67
    %71 = vset.pattern.permute.xlu0 0
    %72 = vperm.xlu0 %71, %v34
    %v73 = vpop.permute.xlu0 %72
    %76 = vset.pattern.permute.xlu0 0
    %77 = vperm.xlu0 %76, %v35
    %v78 = vpop.permute.xlu0 %77
    %81 = vset.pattern.permute.xlu0 0
    %82 = vperm.xlu0 %81, %v36
    %v83 = vpop.permute.xlu0 %82
    %86 = vset.pattern.permute.xlu0 0
    %87 = vperm.xlu0 %86, %v37
    %v88 = vpop.permute.xlu0 %87
    %91 = vset.pattern.permute.xlu0 0
    %92 = vperm.xlu0 %91, %v38
    %v93 = vpop.permute.xlu0 %92
    %96 = vset.pattern.permute.xlu0 0
    %97 = vperm.xlu0 %96, %v39
    %v98 = vpop.permute.xlu0 %97
    %101 = vset.pattern.permute.xlu0 0
    %102 = vperm.xlu0 %101, %v40
    %v103 = vpop.permute.xlu0 %102
    %106 = vset.pattern.permute.xlu0 0
    %107 = vperm.xlu0 %106, %v41
    %v108 = vpop.permute.xlu0 %107
    %111 = vset.pattern.permute.xlu0 0
    %112 = vperm.xlu0 %111, %v42
    %v113 = vpop.permute.xlu0 %112
    %116 = vset.pattern.permute.xlu0 0
    %117 = vperm.xlu0 %116, %v43
    %v118 = vpop.permute.xlu0 %117
    %121 = vset.pattern.permute.xlu0 0
    %122 = vperm.xlu0 %121, %v44
    %v123 = vpop.permute.xlu0 %122
    %v126 = vperm.slane %v27, 0
    %v128 = vmul.f32 %v48, %v126
    %v129 = vmul.f32 %v53, %v126
    %v130 = vmul.f32 %v58, %v126
    %v131 = vmul.f32 %v63, %v126
    %v132 = vmul.f32 %v68, %v126
    %v133 = vmul.f32 %v73, %v126
    %v134 = vmul.f32 %v78, %v126
    %v135 = vmul.f32 %v83, %v126
    %v136 = vmul.f32 %v88, %v126
    %v137 = vmul.f32 %v93, %v126
    %v138 = vmul.f32 %v98, %v126
    %v139 = vmul.f32 %v103, %v126
    %v140 = vmul.f32 %v108, %v126
    %v141 = vmul.f32 %v113, %v126
    %v142 = vmul.f32 %v118, %v126
    %v143 = vmul.f32 %v123, %v126
    %144 = vset.pattern.permute.xlu0 1
    %145 = vperm.xlu0 %144, %v29
    %v146 = vpop.permute.xlu0 %145
    %148 = vset.pattern.permute.xlu0 1
    %149 = vperm.xlu0 %148, %v30
    %v150 = vpop.permute.xlu0 %149
    %152 = vset.pattern.permute.xlu0 1
    %153 = vperm.xlu0 %152, %v31
    %v154 = vpop.permute.xlu0 %153
    %156 = vset.pattern.permute.xlu0 1
    %157 = vperm.xlu0 %156, %v32
    %v158 = vpop.permute.xlu0 %157
    %160 = vset.pattern.permute.xlu0 1
    %161 = vperm.xlu0 %160, %v33
    %v162 = vpop.permute.xlu0 %161
    %164 = vset.pattern.permute.xlu0 1
    %165 = vperm.xlu0 %164, %v34
    %v166 = vpop.permute.xlu0 %165
    %168 = vset.pattern.permute.xlu0 1
    %169 = vperm.xlu0 %168, %v35
    %v170 = vpop.permute.xlu0 %169
    %172 = vset.pattern.permute.xlu0 1
    %173 = vperm.xlu0 %172, %v36
    %v174 = vpop.permute.xlu0 %173
    %176 = vset.pattern.permute.xlu0 1
    %177 = vperm.xlu0 %176, %v37
    %v178 = vpop.permute.xlu0 %177
    %180 = vset.pattern.permute.xlu0 1
    %181 = vperm.xlu0 %180, %v38
    %v182 = vpop.permute.xlu0 %181
    %184 = vset.pattern.permute.xlu0 1
    %185 = vperm.xlu0 %184, %v39
    %v186 = vpop.permute.xlu0 %185
    %188 = vset.pattern.permute.xlu0 1
    %189 = vperm.xlu0 %188, %v40
    %v190 = vpop.permute.xlu0 %189
    %192 = vset.pattern.permute.xlu0 1
    %193 = vperm.xlu0 %192, %v41
    %v194 = vpop.permute.xlu0 %193
    %196 = vset.pattern.permute.xlu0 1
    %197 = vperm.xlu0 %196, %v42
    %v198 = vpop.permute.xlu0 %197
    %200 = vset.pattern.permute.xlu0 1
    %201 = vperm.xlu0 %200, %v43
    %v202 = vpop.permute.xlu0 %201
    %204 = vset.pattern.permute.xlu0 1
    %205 = vperm.xlu0 %204, %v44
    %v206 = vpop.permute.xlu0 %205
    %v208 = vadd.f32 %v128, %v146
    %v209 = vadd.f32 %v129, %v150
    %v210 = vadd.f32 %v130, %v154
    %v211 = vadd.f32 %v131, %v158
    %v212 = vadd.f32 %v132, %v162
    %v213 = vadd.f32 %v133, %v166
    %v214 = vadd.f32 %v134, %v170
    %v215 = vadd.f32 %v135, %v174
    %v216 = vadd.f32 %v136, %v178
    %v217 = vadd.f32 %v137, %v182
    %v218 = vadd.f32 %v138, %v186
    %v219 = vadd.f32 %v139, %v190
    %v220 = vadd.f32 %v140, %v194
    %v221 = vadd.f32 %v141, %v198
    %v222 = vadd.f32 %v142, %v202
    %v223 = vadd.f32 %v143, %v206
    %v224 = vmul.f32 %v208, 0.01
    %v225 = vmul.f32 %v209, 0.01
    %v226 = vmul.f32 %v210, 0.01
    %v227 = vmul.f32 %v211, 0.01
    %v228 = vmul.f32 %v212, 0.01
    %v229 = vmul.f32 %v213, 0.01
    %v230 = vmul.f32 %v214, 0.01
    %v231 = vmul.f32 %v215, 0.01
    %v232 = vmul.f32 %v216, 0.01
    %v233 = vmul.f32 %v217, 0.01
    %v234 = vmul.f32 %v218, 0.01
    %v235 = vmul.f32 %v219, 0.01
    %v236 = vmul.f32 %v220, 0.01
    %v237 = vmul.f32 %v221, 0.01
    %v238 = vmul.f32 %v222, 0.01
    %v239 = vmul.f32 %v223, 0.01
    %v240 = vmax.f32 %v208, %v224
    %v241 = vmax.f32 %v209, %v225
    %v242 = vmax.f32 %v210, %v226
    %v243 = vmax.f32 %v211, %v227
    %v244 = vmax.f32 %v212, %v228
    %v245 = vmax.f32 %v213, %v229
    %v246 = vmax.f32 %v214, %v230
    %v247 = vmax.f32 %v215, %v231
    %v248 = vmax.f32 %v216, %v232
    %v249 = vmax.f32 %v217, %v233
    %v250 = vmax.f32 %v218, %v234
    %v251 = vmax.f32 %v219, %v235
    %v252 = vmax.f32 %v220, %v236
    %v253 = vmax.f32 %v221, %v237
    %v254 = vmax.f32 %v222, %v238
    %v255 = vmax.f32 %v223, %v239
    %v256 = vld [vmem:[%s3] sm:$0xf]
    %v257 = vld [vmem:[%s3 + $0x4] sm:$0xf]
    %v258 = vld [vmem:[%s3 + $0x8] sm:$0xf]
    %v259 = vld [vmem:[%s3 + $0xc] sm:$0xf]
    %v260 = vld [vmem:[%s3 + $0x10] sm:$0xf]
    %v261 = vld [vmem:[%s3 + $0x14] sm:$0xf]
    %v262 = vld [vmem:[%s3 + $0x18] sm:$0xf]
    %v263 = vld [vmem:[%s3 + $0x1c] sm:$0xf]
    %v264 = vld [vmem:[%s3 + $0x20] sm:$0xf]
    %v265 = vld [vmem:[%s3 + $0x24] sm:$0xf]
    %v266 = vld [vmem:[%s3 + $0x28] sm:$0xf]
    %v267 = vld [vmem:[%s3 + $0x2c] sm:$0xf]
    %v268 = vld [vmem:[%s3 + $0x30] sm:$0xf]
    %v269 = vld [vmem:[%s3 + $0x34] sm:$0xf]
    %v270 = vld [vmem:[%s3 + $0x38] sm:$0xf]
    %v271 = vld [vmem:[%s3 + $0x3c] sm:$0xf]
    %v272 = vpack.c.bf16 %v241, %v240
    %v273 = vpack.c.bf16 %v243, %v242
    %v274 = vpack.c.bf16 %v245, %v244
    %v275 = vpack.c.bf16 %v247, %v246
    %v276 = vpack.c.bf16 %v249, %v248
    %v277 = vpack.c.bf16 %v251, %v250
    %v278 = vpack.c.bf16 %v253, %v252
    %v279 = vpack.c.bf16 %v255, %v254
    %280 = vset.pattern.permute.xlu0 2
    %281 = vperm.xlu0 %280, %v29
    %v282 = vpop.permute.xlu0 %281
    %284 = vset.pattern.permute.xlu0 2
    %285 = vperm.xlu0 %284, %v30
    %v286 = vpop.permute.xlu0 %285
    %288 = vset.pattern.permute.xlu0 2
    %289 = vperm.xlu0 %288, %v31
    %v290 = vpop.permute.xlu0 %289
    %292 = vset.pattern.permute.xlu0 2
    %293 = vperm.xlu0 %292, %v32
    %v294 = vpop.permute.xlu0 %293
    %296 = vset.pattern.permute.xlu0 2
    %297 = vperm.xlu0 %296, %v33
    %v298 = vpop.permute.xlu0 %297
    %300 = vset.pattern.permute.xlu0 2
    %301 = vperm.xlu0 %300, %v34
    %v302 = vpop.permute.xlu0 %301
    %304 = vset.pattern.permute.xlu0 2
    %305 = vperm.xlu0 %304, %v35
    %v306 = vpop.permute.xlu0 %305
    %308 = vset.pattern.permute.xlu0 2
    %309 = vperm.xlu0 %308, %v36
    %v310 = vpop.permute.xlu0 %309
    %312 = vset.pattern.permute.xlu0 2
    %313 = vperm.xlu0 %312, %v37
    %v314 = vpop.permute.xlu0 %313
    %316 = vset.pattern.permute.xlu0 2
    %317 = vperm.xlu0 %316, %v38
    %v318 = vpop.permute.xlu0 %317
    %320 = vset.pattern.permute.xlu0 2
    %321 = vperm.xlu0 %320, %v39
    %v322 = vpop.permute.xlu0 %321
    %324 = vset.pattern.permute.xlu0 2
    %325 = vperm.xlu0 %324, %v40
    %v326 = vpop.permute.xlu0 %325
    %328 = vset.pattern.permute.xlu0 2
    %329 = vperm.xlu0 %328, %v41
    %v330 = vpop.permute.xlu0 %329
    %332 = vset.pattern.permute.xlu0 2
    %333 = vperm.xlu0 %332, %v42
    %v334 = vpop.permute.xlu0 %333
    %336 = vset.pattern.permute.xlu0 2
    %337 = vperm.xlu0 %336, %v43
    %v338 = vpop.permute.xlu0 %337
    %340 = vset.pattern.permute.xlu0 2
    %341 = vperm.xlu0 %340, %v44
    %v342 = vpop.permute.xlu0 %341
    %v345 = vperm.slane %v28, 0
    %v347 = vmul.f32 %v282, %v345
    %v348 = vmul.f32 %v286, %v345
    %v349 = vmul.f32 %v290, %v345
    %v350 = vmul.f32 %v294, %v345
    %v351 = vmul.f32 %v298, %v345
    %v352 = vmul.f32 %v302, %v345
    %v353 = vmul.f32 %v306, %v345
    %v354 = vmul.f32 %v310, %v345
    %v355 = vmul.f32 %v314, %v345
    %v356 = vmul.f32 %v318, %v345
    %v357 = vmul.f32 %v322, %v345
    %v358 = vmul.f32 %v326, %v345
    %v359 = vmul.f32 %v330, %v345
    %v360 = vmul.f32 %v334, %v345
    %v361 = vmul.f32 %v338, %v345
    %v362 = vmul.f32 %v342, %v345
    %363 = vset.pattern.permute.xlu0 3
    %364 = vperm.xlu0 %363, %v29
    %v365 = vpop.permute.xlu0 %364
    %367 = vset.pattern.permute.xlu0 3
    %368 = vperm.xlu0 %367, %v30
    %v369 = vpop.permute.xlu0 %368
    %371 = vset.pattern.permute.xlu0 3
    %372 = vperm.xlu0 %371, %v31
    %v373 = vpop.permute.xlu0 %372
    %375 = vset.pattern.permute.xlu0 3
    %376 = vperm.xlu0 %375, %v32
    %v377 = vpop.permute.xlu0 %376
    %379 = vset.pattern.permute.xlu0 3
    %380 = vperm.xlu0 %379, %v33
    %v381 = vpop.permute.xlu0 %380
    %383 = vset.pattern.permute.xlu0 3
    %384 = vperm.xlu0 %383, %v34
    %v385 = vpop.permute.xlu0 %384
    %387 = vset.pattern.permute.xlu0 3
    %388 = vperm.xlu0 %387, %v35
    %v389 = vpop.permute.xlu0 %388
    %391 = vset.pattern.permute.xlu0 3
    %392 = vperm.xlu0 %391, %v36
    %v393 = vpop.permute.xlu0 %392
    %395 = vset.pattern.permute.xlu0 3
    %396 = vperm.xlu0 %395, %v37
    %v397 = vpop.permute.xlu0 %396
    %399 = vset.pattern.permute.xlu0 3
    %400 = vperm.xlu0 %399, %v38
    %v401 = vpop.permute.xlu0 %400
    %403 = vset.pattern.permute.xlu0 3
    %404 = vperm.xlu0 %403, %v39
    %v405 = vpop.permute.xlu0 %404
    %407 = vset.pattern.permute.xlu0 3
    %408 = vperm.xlu0 %407, %v40
    %v409 = vpop.permute.xlu0 %408
    %411 = vset.pattern.permute.xlu0 3
    %412 = vperm.xlu0 %411, %v41
    %v413 = vpop.permute.xlu0 %412
    %415 = vset.pattern.permute.xlu0 3
    %416 = vperm.xlu0 %415, %v42
    %v417 = vpop.permute.xlu0 %416
    %419 = vset.pattern.permute.xlu0 3
    %420 = vperm.xlu0 %419, %v43
    %v421 = vpop.permute.xlu0 %420
    %423 = vset.pattern.permute.xlu0 3
    %424 = vperm.xlu0 %423, %v44
    %v425 = vpop.permute.xlu0 %424
    %v427 = vadd.f32 %v347, %v365
    %v428 = vadd.f32 %v348, %v369
    %v429 = vadd.f32 %v349, %v373
    %v430 = vadd.f32 %v350, %v377
    %v431 = vadd.f32 %v351, %v381
    %v432 = vadd.f32 %v352, %v385
    %v433 = vadd.f32 %v353, %v389
    %v434 = vadd.f32 %v354, %v393
    %v435 = vadd.f32 %v355, %v397
    %v436 = vadd.f32 %v356, %v401
    %v437 = vadd.f32 %v357, %v405
    %v438 = vadd.f32 %v358, %v409
    %v439 = vadd.f32 %v359, %v413
    %v440 = vadd.f32 %v360, %v417
    %v441 = vadd.f32 %v361, %v421
    %v442 = vadd.f32 %v362, %v425
    %v459 = vunpack.c.l.b16 %v256
    %v460 = vunpack.c.l.b16 %v257
    %v461 = vunpack.c.l.b16 %v258
    %v462 = vunpack.c.l.b16 %v259
    %v463 = vunpack.c.l.b16 %v260
    %v464 = vunpack.c.l.b16 %v261
    %v465 = vunpack.c.l.b16 %v262
    %v466 = vunpack.c.l.b16 %v263
    %v467 = vunpack.c.l.b16 %v264
    %v468 = vunpack.c.l.b16 %v265
    %v469 = vunpack.c.l.b16 %v266
    %v470 = vunpack.c.l.b16 %v267
    %v471 = vunpack.c.l.b16 %v268
    %v472 = vunpack.c.l.b16 %v269
    %v473 = vunpack.c.l.b16 %v270
    %v474 = vunpack.c.l.b16 %v271
    %v475 = vpack.c.b16 %v460, %v459
    %v476 = vpack.c.b16 %v462, %v461
    %v477 = vpack.c.b16 %v464, %v463
    %v478 = vpack.c.b16 %v466, %v465
    %v479 = vpack.c.b16 %v468, %v467
    %v480 = vpack.c.b16 %v470, %v469
    %v481 = vpack.c.b16 %v472, %v471
    %v482 = vpack.c.b16 %v474, %v473
    %491 = vmatpush.bf16.msra.mxu0 %v279
    %492 = vmatpush.bf16.msra.mxu0 %v278
    %493 = vmatpush.bf16.msra.mxu0 %v277
    %494 = vmatpush.bf16.msra.mxu0 %v276
    %495 = vmatpush.bf16.msra.mxu0 %v275
    %496 = vmatpush.bf16.msra.mxu0 %v274
    %497 = vmatpush.bf16.msra.mxu0 %v273
    %498 = vmatpush.bf16.msra.mxu0 %v272
    %499 = vmatmul.bf16.gmra.mxu0 %v475
    %v500 = vpop.f32.mrf.mxu0
    %v501 = vadd.f32 %v427, %v500
    %v502 = vpop.f32.mrf.mxu0
    %v503 = vadd.f32 %v428, %v502
    %504 = vmatmul.bf16.gmra.mxu0 %v476
    %v505 = vpop.f32.mrf.mxu0
    %v506 = vadd.f32 %v429, %v505
    %v507 = vpop.f32.mrf.mxu0
    %v508 = vadd.f32 %v430, %v507
    %509 = vmatmul.bf16.gmra.mxu0 %v477
    %v510 = vpop.f32.mrf.mxu0
    %v511 = vadd.f32 %v431, %v510
    %v512 = vpop.f32.mrf.mxu0
    %v513 = vadd.f32 %v432, %v512
    %514 = vmatmul.bf16.gmra.mxu0 %v478
    %v515 = vpop.f32.mrf.mxu0
    %v516 = vadd.f32 %v433, %v515
    %v517 = vpop.f32.mrf.mxu0
    %v518 = vadd.f32 %v434, %v517
    %519 = vmatmul.bf16.gmra.mxu0 %v479
    %v520 = vpop.f32.mrf.mxu0
    %v521 = vadd.f32 %v435, %v520
    %v522 = vpop.f32.mrf.mxu0
    %v523 = vadd.f32 %v436, %v522
    %524 = vmatmul.bf16.gmra.mxu0 %v480
    %v525 = vpop.f32.mrf.mxu0
    %v526 = vadd.f32 %v437, %v525
    %v527 = vpop.f32.mrf.mxu0
    %v528 = vadd.f32 %v438, %v527
    %529 = vmatmul.bf16.gmra.mxu0 %v481
    %v530 = vpop.f32.mrf.mxu0
    %v531 = vadd.f32 %v439, %v530
    %v532 = vpop.f32.mrf.mxu0
    %v533 = vadd.f32 %v440, %v532
    %534 = vmatmul.bf16.gmra.mxu0 %v482
    %v535 = vpop.f32.mrf.mxu0
    %v536 = vadd.f32 %v441, %v535
    %v537 = vpop.f32.mrf.mxu0
    %v538 = vadd.f32 %v442, %v537
    %539 = vdwg.mxu0
    %v540 = vmul.f32 %v501, 0.01
    %v541 = vmul.f32 %v503, 0.01
    %v542 = vmul.f32 %v506, 0.01
    %v543 = vmul.f32 %v508, 0.01
    %v544 = vmul.f32 %v511, 0.01
    %v545 = vmul.f32 %v513, 0.01
    %v546 = vmul.f32 %v516, 0.01
    %v547 = vmul.f32 %v518, 0.01
    %v548 = vmul.f32 %v521, 0.01
    %v549 = vmul.f32 %v523, 0.01
    %v550 = vmul.f32 %v526, 0.01
    %v551 = vmul.f32 %v528, 0.01
    %v552 = vmul.f32 %v531, 0.01
    %v553 = vmul.f32 %v533, 0.01
    %v554 = vmul.f32 %v536, 0.01
    %v555 = vmul.f32 %v538, 0.01
    %v556 = vmax.f32 %v501, %v540
    %v557 = vmax.f32 %v503, %v541
    %v558 = vmax.f32 %v506, %v542
    %v559 = vmax.f32 %v508, %v543
    %v560 = vmax.f32 %v511, %v544
    %v561 = vmax.f32 %v513, %v545
    %v562 = vmax.f32 %v516, %v546
    %v563 = vmax.f32 %v518, %v547
    %v564 = vmax.f32 %v521, %v548
    %v565 = vmax.f32 %v523, %v549
    %v566 = vmax.f32 %v526, %v550
    %v567 = vmax.f32 %v528, %v551
    %v568 = vmax.f32 %v531, %v552
    %v569 = vmax.f32 %v533, %v553
    %v570 = vmax.f32 %v536, %v554
    %v571 = vmax.f32 %v538, %v555
    %v572 = vld [vmem:[%s4] sm:$0xf]
    %v573 = vld [vmem:[%s4 + $0x4] sm:$0xf]
    %v574 = vld [vmem:[%s4 + $0x8] sm:$0xf]
    %v575 = vld [vmem:[%s4 + $0xc] sm:$0xf]
    %v576 = vld [vmem:[%s4 + $0x10] sm:$0xf]
    %v577 = vld [vmem:[%s4 + $0x14] sm:$0xf]
    %v578 = vld [vmem:[%s4 + $0x18] sm:$0xf]
    %v579 = vld [vmem:[%s4 + $0x1c] sm:$0xf]
    %v580 = vld [vmem:[%s4 + $0x20] sm:$0xf]
    %v581 = vld [vmem:[%s4 + $0x24] sm:$0xf]
    %v582 = vld [vmem:[%s4 + $0x28] sm:$0xf]
    %v583 = vld [vmem:[%s4 + $0x2c] sm:$0xf]
    %v584 = vld [vmem:[%s4 + $0x30] sm:$0xf]
    %v585 = vld [vmem:[%s4 + $0x34] sm:$0xf]
    %v586 = vld [vmem:[%s4 + $0x38] sm:$0xf]
    %v587 = vld [vmem:[%s4 + $0x3c] sm:$0xf]
    %v588 = vpack.c.bf16 %v557, %v556
    %v589 = vpack.c.bf16 %v559, %v558
    %v590 = vpack.c.bf16 %v561, %v560
    %v591 = vpack.c.bf16 %v563, %v562
    %v592 = vpack.c.bf16 %v565, %v564
    %v593 = vpack.c.bf16 %v567, %v566
    %v594 = vpack.c.bf16 %v569, %v568
    %v595 = vpack.c.bf16 %v571, %v570
    %596 = vset.pattern.permute.xlu0 4
    %597 = vperm.xlu0 %596, %v29
    %v598 = vpop.permute.xlu0 %597
    %600 = vset.pattern.permute.xlu0 4
    %601 = vperm.xlu0 %600, %v30
    %v602 = vpop.permute.xlu0 %601
    %604 = vset.pattern.permute.xlu0 4
    %605 = vperm.xlu0 %604, %v31
    %v606 = vpop.permute.xlu0 %605
    %608 = vset.pattern.permute.xlu0 4
    %609 = vperm.xlu0 %608, %v32
    %v610 = vpop.permute.xlu0 %609
    %612 = vset.pattern.permute.xlu0 4
    %613 = vperm.xlu0 %612, %v33
    %v614 = vpop.permute.xlu0 %613
    %616 = vset.pattern.permute.xlu0 4
    %617 = vperm.xlu0 %616, %v34
    %v618 = vpop.permute.xlu0 %617
    %620 = vset.pattern.permute.xlu0 4
    %621 = vperm.xlu0 %620, %v35
    %v622 = vpop.permute.xlu0 %621
    %624 = vset.pattern.permute.xlu0 4
    %625 = vperm.xlu0 %624, %v36
    %v626 = vpop.permute.xlu0 %625
    %628 = vset.pattern.permute.xlu0 4
    %629 = vperm.xlu0 %628, %v37
    %v630 = vpop.permute.xlu0 %629
    %632 = vset.pattern.permute.xlu0 4
    %633 = vperm.xlu0 %632, %v38
    %v634 = vpop.permute.xlu0 %633
    %636 = vset.pattern.permute.xlu0 4
    %637 = vperm.xlu0 %636, %v39
    %v638 = vpop.permute.xlu0 %637
    %640 = vset.pattern.permute.xlu0 4
    %641 = vperm.xlu0 %640, %v40
    %v642 = vpop.permute.xlu0 %641
    %644 = vset.pattern.permute.xlu0 4
    %645 = vperm.xlu0 %644, %v41
    %v646 = vpop.permute.xlu0 %645
    %648 = vset.pattern.permute.xlu0 4
    %649 = vperm.xlu0 %648, %v42
    %v650 = vpop.permute.xlu0 %649
    %652 = vset.pattern.permute.xlu0 4
    %653 = vperm.xlu0 %652, %v43
    %v654 = vpop.permute.xlu0 %653
    %656 = vset.pattern.permute.xlu0 4
    %657 = vperm.xlu0 %656, %v44
    %v658 = vpop.permute.xlu0 %657
    %v660 = vmul.f32 %v598, %v345
    %v661 = vmul.f32 %v602, %v345
    %v662 = vmul.f32 %v606, %v345
    %v663 = vmul.f32 %v610, %v345
    %v664 = vmul.f32 %v614, %v345
    %v665 = vmul.f32 %v618, %v345
    %v666 = vmul.f32 %v622, %v345
    %v667 = vmul.f32 %v626, %v345
    %v668 = vmul.f32 %v630, %v345
    %v669 = vmul.f32 %v634, %v345
    %v670 = vmul.f32 %v638, %v345
    %v671 = vmul.f32 %v642, %v345
    %v672 = vmul.f32 %v646, %v345
    %v673 = vmul.f32 %v650, %v345
    %v674 = vmul.f32 %v654, %v345
    %v675 = vmul.f32 %v658, %v345
    %676 = vset.pattern.permute.xlu0 5
    %677 = vperm.xlu0 %676, %v29
    %v678 = vpop.permute.xlu0 %677
    %680 = vset.pattern.permute.xlu0 5
    %681 = vperm.xlu0 %680, %v30
    %v682 = vpop.permute.xlu0 %681
    %684 = vset.pattern.permute.xlu0 5
    %685 = vperm.xlu0 %684, %v31
    %v686 = vpop.permute.xlu0 %685
    %688 = vset.pattern.permute.xlu0 5
    %689 = vperm.xlu0 %688, %v32
    %v690 = vpop.permute.xlu0 %689
    %692 = vset.pattern.permute.xlu0 5
    %693 = vperm.xlu0 %692, %v33
    %v694 = vpop.permute.xlu0 %693
    %696 = vset.pattern.permute.xlu0 5
    %697 = vperm.xlu0 %696, %v34
    %v698 = vpop.permute.xlu0 %697
    %700 = vset.pattern.permute.xlu0 5
    %701 = vperm.xlu0 %700, %v35
    %v702 = vpop.permute.xlu0 %701
    %704 = vset.pattern.permute.xlu0 5
    %705 = vperm.xlu0 %704, %v36
    %v706 = vpop.permute.xlu0 %705
    %708 = vset.pattern.permute.xlu0 5
    %709 = vperm.xlu0 %708, %v37
    %v710 = vpop.permute.xlu0 %709
    %712 = vset.pattern.permute.xlu0 5
    %713 = vperm.xlu0 %712, %v38
    %v714 = vpop.permute.xlu0 %713
    %716 = vset.pattern.permute.xlu0 5
    %717 = vperm.xlu0 %716, %v39
    %v718 = vpop.permute.xlu0 %717
    %720 = vset.pattern.permute.xlu0 5
    %721 = vperm.xlu0 %720, %v40
    %v722 = vpop.permute.xlu0 %721
    %724 = vset.pattern.permute.xlu0 5
    %725 = vperm.xlu0 %724, %v41
    %v726 = vpop.permute.xlu0 %725
    %728 = vset.pattern.permute.xlu0 5
    %729 = vperm.xlu0 %728, %v42
    %v730 = vpop.permute.xlu0 %729
    %732 = vset.pattern.permute.xlu0 5
    %733 = vperm.xlu0 %732, %v43
    %v734 = vpop.permute.xlu0 %733
    %736 = vset.pattern.permute.xlu0 5
    %737 = vperm.xlu0 %736, %v44
    %v738 = vpop.permute.xlu0 %737
    %v740 = vadd.f32 %v660, %v678
    %v741 = vadd.f32 %v661, %v682
    %v742 = vadd.f32 %v662, %v686
    %v743 = vadd.f32 %v663, %v690
    %v744 = vadd.f32 %v664, %v694
    %v745 = vadd.f32 %v665, %v698
    %v746 = vadd.f32 %v666, %v702
    %v747 = vadd.f32 %v667, %v706
    %v748 = vadd.f32 %v668, %v710
    %v749 = vadd.f32 %v669, %v714
    %v750 = vadd.f32 %v670, %v718
    %v751 = vadd.f32 %v671, %v722
    %v752 = vadd.f32 %v672, %v726
    %v753 = vadd.f32 %v673, %v730
    %v754 = vadd.f32 %v674, %v734
    %v755 = vadd.f32 %v675, %v738
    %v772 = vunpack.c.l.b16 %v572
    %v773 = vunpack.c.l.b16 %v573
    %v774 = vunpack.c.l.b16 %v574
    %v775 = vunpack.c.l.b16 %v575
    %v776 = vunpack.c.l.b16 %v576
    %v777 = vunpack.c.l.b16 %v577
    %v778 = vunpack.c.l.b16 %v578
    %v779 = vunpack.c.l.b16 %v579
    %v780 = vunpack.c.l.b16 %v580
    %v781 = vunpack.c.l.b16 %v581
    %v782 = vunpack.c.l.b16 %v582
    %v783 = vunpack.c.l.b16 %v583
    %v784 = vunpack.c.l.b16 %v584
    %v785 = vunpack.c.l.b16 %v585
    %v786 = vunpack.c.l.b16 %v586
    %v787 = vunpack.c.l.b16 %v587
    %v788 = vpack.c.b16 %v773, %v772
    %v789 = vpack.c.b16 %v775, %v774
    %v790 = vpack.c.b16 %v777, %v776
    %v791 = vpack.c.b16 %v779, %v778
    %v792 = vpack.c.b16 %v781, %v780
    %v793 = vpack.c.b16 %v783, %v782
    %v794 = vpack.c.b16 %v785, %v784
    %v795 = vpack.c.b16 %v787, %v786
    %804 = vmatpush.bf16.msra.mxu0 %v595
    %805 = vmatpush.bf16.msra.mxu0 %v594
    %806 = vmatpush.bf16.msra.mxu0 %v593
    %807 = vmatpush.bf16.msra.mxu0 %v592
    %808 = vmatpush.bf16.msra.mxu0 %v591
    %809 = vmatpush.bf16.msra.mxu0 %v590
    %810 = vmatpush.bf16.msra.mxu0 %v589
    %811 = vmatpush.bf16.msra.mxu0 %v588
    %812 = vmatmul.bf16.gmra.mxu0 %v788
    %v813 = vpop.f32.mrf.mxu0
    %v814 = vadd.f32 %v740, %v813
    %v815 = vpop.f32.mrf.mxu0
    %v816 = vadd.f32 %v741, %v815
    %817 = vmatmul.bf16.gmra.mxu0 %v789
    %v818 = vpop.f32.mrf.mxu0
    %v819 = vadd.f32 %v742, %v818
    %v820 = vpop.f32.mrf.mxu0
    %v821 = vadd.f32 %v743, %v820
    %822 = vmatmul.bf16.gmra.mxu0 %v790
    %v823 = vpop.f32.mrf.mxu0
    %v824 = vadd.f32 %v744, %v823
    %v825 = vpop.f32.mrf.mxu0
    %v826 = vadd.f32 %v745, %v825
    %827 = vmatmul.bf16.gmra.mxu0 %v791
    %v828 = vpop.f32.mrf.mxu0
    %v829 = vadd.f32 %v746, %v828
    %v830 = vpop.f32.mrf.mxu0
    %v831 = vadd.f32 %v747, %v830
    %832 = vmatmul.bf16.gmra.mxu0 %v792
    %v833 = vpop.f32.mrf.mxu0
    %v834 = vadd.f32 %v748, %v833
    %v835 = vpop.f32.mrf.mxu0
    %v836 = vadd.f32 %v749, %v835
    %837 = vmatmul.bf16.gmra.mxu0 %v793
    %v838 = vpop.f32.mrf.mxu0
    %v839 = vadd.f32 %v750, %v838
    %v840 = vpop.f32.mrf.mxu0
    %v841 = vadd.f32 %v751, %v840
    %842 = vmatmul.bf16.gmra.mxu0 %v794
    %v843 = vpop.f32.mrf.mxu0
    %v844 = vadd.f32 %v752, %v843
    %v845 = vpop.f32.mrf.mxu0
    %v846 = vadd.f32 %v753, %v845
    %847 = vmatmul.bf16.gmra.mxu0 %v795
    %v848 = vpop.f32.mrf.mxu0
    %v849 = vadd.f32 %v754, %v848
    %v850 = vpop.f32.mrf.mxu0
    %v851 = vadd.f32 %v755, %v850
    %852 = vdwg.mxu0
    %v853 = vmul.f32 %v814, 0.01
    %v854 = vmul.f32 %v816, 0.01
    %v855 = vmul.f32 %v819, 0.01
    %v856 = vmul.f32 %v821, 0.01
    %v857 = vmul.f32 %v824, 0.01
    %v858 = vmul.f32 %v826, 0.01
    %v859 = vmul.f32 %v829, 0.01
    %v860 = vmul.f32 %v831, 0.01
    %v861 = vmul.f32 %v834, 0.01
    %v862 = vmul.f32 %v836, 0.01
    %v863 = vmul.f32 %v839, 0.01
    %v864 = vmul.f32 %v841, 0.01
    %v865 = vmul.f32 %v844, 0.01
    %v866 = vmul.f32 %v846, 0.01
    %v867 = vmul.f32 %v849, 0.01
    %v868 = vmul.f32 %v851, 0.01
    %v869 = vmax.f32 %v814, %v853
    %v870 = vmax.f32 %v816, %v854
    %v871 = vmax.f32 %v819, %v855
    %v872 = vmax.f32 %v821, %v856
    %v873 = vmax.f32 %v824, %v857
    %v874 = vmax.f32 %v826, %v858
    %v875 = vmax.f32 %v829, %v859
    %v876 = vmax.f32 %v831, %v860
    %v877 = vmax.f32 %v834, %v861
    %v878 = vmax.f32 %v836, %v862
    %v879 = vmax.f32 %v839, %v863
    %v880 = vmax.f32 %v841, %v864
    %v881 = vmax.f32 %v844, %v865
    %v882 = vmax.f32 %v846, %v866
    %v883 = vmax.f32 %v849, %v867
    %v884 = vmax.f32 %v851, %v868
    %v885 = vld [vmem:[%s5] sm:$0xf]
    %v886 = vpack.c.bf16 %v870, %v869
    %v887 = vpack.c.bf16 %v872, %v871
    %v888 = vpack.c.bf16 %v874, %v873
    %v889 = vpack.c.bf16 %v876, %v875
    %v890 = vpack.c.bf16 %v878, %v877
    %v891 = vpack.c.bf16 %v880, %v879
    %v892 = vpack.c.bf16 %v882, %v881
    %v893 = vpack.c.bf16 %v884, %v883
    %v894 = vld [vmem:[%s6] sm:$0xff]
    %896 = vset.pattern.permute.xlu0 0
    %897 = vperm.xlu0 %896, %v894
    %v898 = vpop.permute.xlu0 %897
    %900 = vmatpush.bf16.msra.mxu0 %v893
    %901 = vmatpush.bf16.msra.mxu0 %v892
    %902 = vmatpush.bf16.msra.mxu0 %v891
    %903 = vmatpush.bf16.msra.mxu0 %v890
    %904 = vmatpush.bf16.msra.mxu0 %v889
    %905 = vmatpush.bf16.msra.mxu0 %v888
    %906 = vmatpush.bf16.msra.mxu0 %v887
    %907 = vmatpush.bf16.msra.mxu0 %v886
    %908 = vmatmul.bf16.gmra.mxu0 %v885
    %v909 = vpop.f32.mrf.mxu0
    %v910 = vadd.f32 %v898, %v909
    %v911 = vpop.f32.mrf.mxu0
    %912 = vdwg.mxu0
    %v913 = vlaneseq
    %v914 = vshrl.u32 %v913, 7
    %vm915 = vcmp.eq.s32.totalorder %v914, 1
    %v916 = vand.u32 2147483647, %v910
    %v917 = vadd.f32 %v916, 0.01
    %v918 = vsel %vm915, %v917, %v910
    %919 = vst [vmem:[#allocation2] sm:$0x3] %v918
    // Predicated region
    $region30: #{tpu_custom_call.1} parent=1 // pred_check
      _
    $region31: #{tpu_custom_call.1} parent=1 // pred_check_branch
      %921 = sbr.rel (0) target = $region33
    $region32: #{tpu_custom_call.1} parent=1 // pred_region
      %923 = vsyncadd [#allocation3], 0
      %s925 = sshll.u32 [#allocation2], 4
      %s926 = int_to_ptr.vmem [resolvable:$true] %s925
      %s927 = sshll.u32 %s7, 4
      %s928 = int_to_ptr.hbm [resolvable:$true] %s927
      %930 = dma.vmem_to_hbm [thread:$0]  %s926, 32, %s928, [#allocation3]
    $region33: #{tpu_custom_call.1} parent=1 // pred_fallthru
      _
    // Predicated region
    $region34: #{tpu_custom_call.1} parent=1 // pred_check
      _
    $region35: #{tpu_custom_call.1} parent=1 // pred_check_branch
      %932 = sbr.rel (0) target = $region37
    $region36: #{tpu_custom_call.1} parent=1 // pred_region
      %934 = dma.done [#allocation3], 32
    $region37: #{tpu_custom_call.1} parent=1 // pred_fallthru
      _
    %935 = vsyncpa [#allocation3], 1

</llo_original>
